<compile_context>
chip_gen: v5e
topology: v5e:2x2
jax: 0.10.0
libtpu: 0.0.40
codegen_flags: <defaults>
</compile_context>

<pallas_src>
import functools

import jax
import jax.numpy as jnp
from jax.experimental import pallas as pl
from jax.experimental.pallas import tpu as pltpu

_LANE = 128


def _round_up(x, m):
    return ((x + m - 1) // m) * m


def mlp_kernel(x_ref,
               w1_ref, b1_ref,
               w2_ref, b2_ref,
               w3_ref, b3_ref,
               w4_ref, b4_ref,
               o_ref):
    # One batch tile per grid step. Matmuls run on the MXU in the weights' dtype
    # (bf16 by default) with f32 accumulation; bias-add / ReLU stay f32 on the VPU.
    h = jnp.dot(x_ref[...], w1_ref[...],
                preferred_element_type=jnp.float32) + b1_ref[...]
    h = jnp.maximum(h, 0.0)

    h = jnp.dot(h.astype(w2_ref.dtype), w2_ref[...],
                preferred_element_type=jnp.float32) + b2_ref[...]
    h = jnp.maximum(h, 0.0)

    h = jnp.dot(h.astype(w3_ref.dtype), w3_ref[...],
                preferred_element_type=jnp.float32) + b3_ref[...]
    h = jnp.maximum(h, 0.0)

    out = jnp.dot(h.astype(w4_ref.dtype), w4_ref[...],
                  preferred_element_type=jnp.float32) + b4_ref[...]

    o_ref[...] = out.astype(o_ref.dtype)


@functools.partial(jax.jit, static_argnames=("block_batch", "compute_dtype"))
def mlp_forward(x, params, *, block_batch=1024, compute_dtype=jnp.bfloat16):
    """x: [B, input_dim] float32; params: dict of weights [in,out] and biases [1,out]."""
    B, input_dim = x.shape
    output_dim = params["w4"].shape[1]

    # Batch tile: multiple of 256 (MXU row height on v6e/v7x, also 128-aligned for
    # v5e), but no larger than needed for small batches.
    tb = min(block_batch, _round_up(B, 256))
    b_pad = _round_up(B, tb)
    n_blocks = b_pad // tb

    # Lane-dense output: pad the last Linear to a multiple of 128 lanes.
    out_pad = _round_up(output_dim, _LANE)

    xp = x.astype(compute_dtype)
    if b_pad != B:
        xp = jnp.pad(xp, ((0, b_pad - B), (0, 0)))

    w1 = params["w1"].astype(compute_dtype)
    w2 = params["w2"].astype(compute_dtype)
    w3 = params["w3"].astype(compute_dtype)
    w4 = params["w4"].astype(compute_dtype)
    # Biases stay f32 (tiny; keeps the bias-add/ReLU math in f32 everywhere).
    b1 = params["b1"].astype(jnp.float32)
    b2 = params["b2"].astype(jnp.float32)
    b3 = params["b3"].astype(jnp.float32)
    b4 = params["b4"].astype(jnp.float32)
    if out_pad != output_dim:
        w4 = jnp.pad(w4, ((0, 0), (0, out_pad - output_dim)))
        b4 = jnp.pad(b4, ((0, 0), (0, out_pad - output_dim)))

    # Weights/biases: full-array block at a constant block index -> VMEM-resident.
    def resident(a):
        return pl.BlockSpec(a.shape, lambda i: (0,) * a.ndim)

    out = pl.pallas_call(
        mlp_kernel,
        out_shape=jax.ShapeDtypeStruct((b_pad, out_pad), jnp.float32),
        grid_spec=pltpu.PrefetchScalarGridSpec(
            num_scalar_prefetch=0,
            grid=(n_blocks,),
            in_specs=[
                pl.BlockSpec((tb, input_dim), lambda i: (i, 0)),  # x: batch-tiled
                resident(w1), resident(b1),
                resident(w2), resident(b2),
                resident(w3), resident(b3),
                resident(w4), resident(b4),
            ],
            out_specs=pl.BlockSpec((tb, out_pad), lambda i: (i, 0)),
        ),
        compiler_params=pltpu.CompilerParams(
            dimension_semantics=("parallel",),  # megacore sharding on v7x; no-op on v5e/v6e
        ),
    )(xp, w1, b1, w2, b2, w3, b3, w4, b4)

    return out[:B, :output_dim]


def init_params(key, input_dim, output_dim):
    """Deterministic init mimicking nn.Linear's uniform(-1/sqrt(fan_in), +...)."""
    dims = [input_dim, 256, 128, 64, output_dim]
    params = {}
    for i in range(4):
        fan_in, fan_out = dims[i], dims[i + 1]
        key, kw, kb = jax.random.split(key, 3)
        bound = 1.0 / (fan_in ** 0.5)
        params[f"w{i+1}"] = jax.random.uniform(
            kw, (fan_in, fan_out), jnp.float32, minval=-bound, maxval=bound)
        # biases kept 2D (1, fan_out) for clean TPU lane layout / broadcasting
        params[f"b{i+1}"] = jax.random.uniform(
            kb, (1, fan_out), jnp.float32, minval=-bound, maxval=bound)
    return params


def mlp_reference(x, params):
    h = jnp.maximum(x @ params["w1"] + params["b1"], 0.0)
    h = jnp.maximum(h @ params["w2"] + params["b2"], 0.0)
    h = jnp.maximum(h @ params["w3"] + params["b3"], 0.0)
    return h @ params["w4"] + params["b4"]


if __name__ == "__main__":
    batch = 8
    input_dim = 32
    output_dim = 8

    key = jax.random.PRNGKey(0)
    key, kx = jax.random.split(key)
    x = jax.random.normal(kx, (batch, input_dim), jnp.float32)
    params = init_params(key, input_dim, output_dim)

    ref = mlp_reference(x, params)

    # Full-f32 path: validates kernel structure, batch tiling, and lane padding exactly.
    out_f32 = jax.block_until_ready(
        mlp_forward(x, params, compute_dtype=jnp.float32))
    assert out_f32.shape == (batch, output_dim)
    assert jnp.allclose(out_f32, ref, atol=1e-5, rtol=1e-5), "f32 mismatch vs reference"

    # Default bf16-MXU path (f32 accumulation): loose tolerance for bf16 input rounding.
    out_bf16 = jax.block_until_ready(mlp_forward(x, params))
    assert out_bf16.shape == (batch, output_dim)
    assert jnp.allclose(out_bf16, ref, atol=5e-2, rtol=5e-2), "bf16 mismatch vs reference"

    print("KERNEL_OK")
</pallas_src>

<mosaic_0001>
module attributes {stable_mosaic.version = 11 : i64} {
  func.func @mlp_kernel(%arg0: i32, %arg1: memref<256x32xf32, #tpu.memory_space<vmem>>, %arg2: memref<32x256xf32, #tpu.memory_space<vmem>>, %arg3: memref<1x256xf32, #tpu.memory_space<vmem>>, %arg4: memref<256x128xf32, #tpu.memory_space<vmem>>, %arg5: memref<1x128xf32, #tpu.memory_space<vmem>>, %arg6: memref<128x64xf32, #tpu.memory_space<vmem>>, %arg7: memref<1x64xf32, #tpu.memory_space<vmem>>, %arg8: memref<64x128xf32, #tpu.memory_space<vmem>>, %arg9: memref<1x128xf32, #tpu.memory_space<vmem>>, %arg10: memref<256x128xf32, #tpu.memory_space<vmem>>) attributes {dimension_semantics = [#tpu.dimension_semantics<parallel>], iteration_bounds = array<i64: 1>, scalar_prefetch = 0 : i64, scratch_operands = 0 : i64, tpu.core_type = #tpu.core_type<tc>, window_params = [{transform_indices = @transform_0, window_bounds = array<i64: 256, 32>}, {pipeline_mode = #tpu.pipeline_mode<synchronous>, transform_indices = @transform_1, window_bounds = array<i64: 32, 256>}, {pipeline_mode = #tpu.pipeline_mode<synchronous>, transform_indices = @transform_2, window_bounds = array<i64: 1, 256>}, {pipeline_mode = #tpu.pipeline_mode<synchronous>, transform_indices = @transform_3, window_bounds = array<i64: 256, 128>}, {pipeline_mode = #tpu.pipeline_mode<synchronous>, transform_indices = @transform_4, window_bounds = array<i64: 1, 128>}, {pipeline_mode = #tpu.pipeline_mode<synchronous>, transform_indices = @transform_5, window_bounds = array<i64: 128, 64>}, {pipeline_mode = #tpu.pipeline_mode<synchronous>, transform_indices = @transform_6, window_bounds = array<i64: 1, 64>}, {pipeline_mode = #tpu.pipeline_mode<synchronous>, transform_indices = @transform_7, window_bounds = array<i64: 64, 128>}, {pipeline_mode = #tpu.pipeline_mode<synchronous>, transform_indices = @transform_8, window_bounds = array<i64: 1, 128>}, {transform_indices = @transform_9, window_bounds = array<i64: 256, 128>}]} {
    %c0 = arith.constant 0 : index
    %c0_0 = arith.constant 0 : index
    %0 = vector.load %arg1[%c0, %c0_0] : memref<256x32xf32, #tpu.memory_space<vmem>>, vector<256x32xf32>
    %c0_1 = arith.constant 0 : index
    %c0_2 = arith.constant 0 : index
    %1 = vector.load %arg2[%c0_1, %c0_2] : memref<32x256xf32, #tpu.memory_space<vmem>>, vector<32x256xf32>
    %cst = arith.constant dense<0.000000e+00> : vector<256x256xf32>
    %2 = tpu.matmul %0, %1, %cst {dimension_numbers = #tpu.dot_dimension_numbers<[1], [0], [0], [1], [0, 0, 1, 1], [], []>} : vector<256x32xf32>, vector<32x256xf32>, vector<256x256xf32> -> vector<256x256xf32>
    %c0_3 = arith.constant 0 : index
    %c0_4 = arith.constant 0 : index
    %3 = vector.load %arg3[%c0_3, %c0_4] : memref<1x256xf32, #tpu.memory_space<vmem>>, vector<1x256xf32>
    %4 = vector.broadcast %3 : vector<1x256xf32> to vector<256x256xf32>
    %5 = arith.addf %2, %4 : vector<256x256xf32>
    %cst_5 = arith.constant 0.000000e+00 : f32
    %6 = vector.broadcast %cst_5 : f32 to vector<256x256xf32>
    %7 = arith.maximumf %5, %6 : vector<256x256xf32>
    %c0_6 = arith.constant 0 : index
    %c0_7 = arith.constant 0 : index
    %8 = vector.load %arg4[%c0_6, %c0_7] : memref<256x128xf32, #tpu.memory_space<vmem>>, vector<256x128xf32>
    %cst_8 = arith.constant dense<0.000000e+00> : vector<256x128xf32>
    %9 = tpu.matmul %7, %8, %cst_8 {dimension_numbers = #tpu.dot_dimension_numbers<[1], [0], [0], [1], [0, 0, 1, 1], [], []>} : vector<256x256xf32>, vector<256x128xf32>, vector<256x128xf32> -> vector<256x128xf32>
    %c0_9 = arith.constant 0 : index
    %c0_10 = arith.constant 0 : index
    %10 = vector.load %arg5[%c0_9, %c0_10] : memref<1x128xf32, #tpu.memory_space<vmem>>, vector<1x128xf32>
    %11 = vector.broadcast %10 : vector<1x128xf32> to vector<256x128xf32>
    %12 = arith.addf %9, %11 : vector<256x128xf32>
    %cst_11 = arith.constant 0.000000e+00 : f32
    %13 = vector.broadcast %cst_11 : f32 to vector<256x128xf32>
    %14 = arith.maximumf %12, %13 : vector<256x128xf32>
    %c0_12 = arith.constant 0 : index
    %c0_13 = arith.constant 0 : index
    %15 = vector.load %arg6[%c0_12, %c0_13] : memref<128x64xf32, #tpu.memory_space<vmem>>, vector<128x64xf32>
    %cst_14 = arith.constant dense<0.000000e+00> : vector<256x64xf32>
    %16 = tpu.matmul %14, %15, %cst_14 {dimension_numbers = #tpu.dot_dimension_numbers<[1], [0], [0], [1], [0, 0, 1, 1], [], []>} : vector<256x128xf32>, vector<128x64xf32>, vector<256x64xf32> -> vector<256x64xf32>
    %c0_15 = arith.constant 0 : index
    %c0_16 = arith.constant 0 : index
    %17 = vector.load %arg7[%c0_15, %c0_16] : memref<1x64xf32, #tpu.memory_space<vmem>>, vector<1x64xf32>
    %18 = vector.broadcast %17 : vector<1x64xf32> to vector<256x64xf32>
    %19 = arith.addf %16, %18 : vector<256x64xf32>
    %cst_17 = arith.constant 0.000000e+00 : f32
    %20 = vector.broadcast %cst_17 : f32 to vector<256x64xf32>
    %21 = arith.maximumf %19, %20 : vector<256x64xf32>
    %c0_18 = arith.constant 0 : index
    %c0_19 = arith.constant 0 : index
    %22 = vector.load %arg8[%c0_18, %c0_19] : memref<64x128xf32, #tpu.memory_space<vmem>>, vector<64x128xf32>
    %cst_20 = arith.constant dense<0.000000e+00> : vector<256x128xf32>
    %23 = tpu.matmul %21, %22, %cst_20 {dimension_numbers = #tpu.dot_dimension_numbers<[1], [0], [0], [1], [0, 0, 1, 1], [], []>} : vector<256x64xf32>, vector<64x128xf32>, vector<256x128xf32> -> vector<256x128xf32>
    %c0_21 = arith.constant 0 : index
    %c0_22 = arith.constant 0 : index
    %24 = vector.load %arg9[%c0_21, %c0_22] : memref<1x128xf32, #tpu.memory_space<vmem>>, vector<1x128xf32>
    %25 = vector.broadcast %24 : vector<1x128xf32> to vector<256x128xf32>
    %26 = arith.addf %23, %25 : vector<256x128xf32>
    %c0_23 = arith.constant 0 : index
    %c0_24 = arith.constant 0 : index
    %27 = vector.load %arg10[%c0_23, %c0_24] : memref<256x128xf32, #tpu.memory_space<vmem>>, vector<256x128xf32>
    tpu.vector_store %arg10[%c0_23, %c0_24], %26 {strides = array<i32>} : memref<256x128xf32, #tpu.memory_space<vmem>>, vector<256x128xf32>,
    return
  }
  func.func @transform_0(%arg0: i32) -> (i32, i32) {
    %c0_i32 = arith.constant 0 : i32
    %c0_i32_0 = arith.constant 0 : i32
    return %arg0, %c0_i32 : i32, i32
  }
  func.func @transform_1(%arg0: i32) -> (i32, i32) {
    %c0_i32 = arith.constant 0 : i32
    %c0_i32_0 = arith.constant 0 : i32
    %c0_i32_1 = arith.constant 0 : i32
    return %c0_i32, %c0_i32_0 : i32, i32
  }
  func.func @transform_2(%arg0: i32) -> (i32, i32) {
    %c0_i32 = arith.constant 0 : i32
    %c0_i32_0 = arith.constant 0 : i32
    %c0_i32_1 = arith.constant 0 : i32
    return %c0_i32, %c0_i32_0 : i32, i32
  }
  func.func @transform_3(%arg0: i32) -> (i32, i32) {
    %c0_i32 = arith.constant 0 : i32
    %c0_i32_0 = arith.constant 0 : i32
    %c0_i32_1 = arith.constant 0 : i32
    return %c0_i32, %c0_i32_0 : i32, i32
  }
  func.func @transform_4(%arg0: i32) -> (i32, i32) {
    %c0_i32 = arith.constant 0 : i32
    %c0_i32_0 = arith.constant 0 : i32
    %c0_i32_1 = arith.constant 0 : i32
    return %c0_i32, %c0_i32_0 : i32, i32
  }
  func.func @transform_5(%arg0: i32) -> (i32, i32) {
    %c0_i32 = arith.constant 0 : i32
    %c0_i32_0 = arith.constant 0 : i32
    %c0_i32_1 = arith.constant 0 : i32
    return %c0_i32, %c0_i32_0 : i32, i32
  }
  func.func @transform_6(%arg0: i32) -> (i32, i32) {
    %c0_i32 = arith.constant 0 : i32
    %c0_i32_0 = arith.constant 0 : i32
    %c0_i32_1 = arith.constant 0 : i32
    return %c0_i32, %c0_i32_0 : i32, i32
  }
  func.func @transform_7(%arg0: i32) -> (i32, i32) {
    %c0_i32 = arith.constant 0 : i32
    %c0_i32_0 = arith.constant 0 : i32
    %c0_i32_1 = arith.constant 0 : i32
    return %c0_i32, %c0_i32_0 : i32, i32
  }
  func.func @transform_8(%arg0: i32) -> (i32, i32) {
    %c0_i32 = arith.constant 0 : i32
    %c0_i32_0 = arith.constant 0 : i32
    %c0_i32_1 = arith.constant 0 : i32
    return %c0_i32, %c0_i32_0 : i32, i32
  }
  func.func @transform_9(%arg0: i32) -> (i32, i32) {
    %c0_i32 = arith.constant 0 : i32
    %c0_i32_0 = arith.constant 0 : i32
    return %arg0, %c0_i32 : i32, i32
  }
}

</mosaic_0001>

<llo_original>
// kernel: mlp_forward.1
$region0: #{mlp_forward.1}
  #allocation0 [shape = 'u32[]', space=smem, size = 0x4, offset = 0x4, fixed_abs, tag = 'smem constant byte address 0x4 - core index']
  #allocation1 [shape = 'u32[72,128]{1,0:T(1,128)}', space=vmem, size = 0x9000, scoped, tag = 'internal scratch']
  %s0 = inlined_call_operand.vmem [shape: f32[256,32], index: 0, kind: input, shape index: {}]
  %s1 = inlined_call_operand.vmem [shape: f32[32,256], index: 1, kind: input, shape index: {}]
  %s2 = inlined_call_operand.vmem [shape: f32[1,256], index: 2, kind: input, shape index: {}]
  %s3 = inlined_call_operand.vmem [shape: f32[256,128], index: 3, kind: input, shape index: {}]
  %s4 = inlined_call_operand.vmem [shape: f32[1,128], index: 4, kind: input, shape index: {}]
  %s5 = inlined_call_operand.vmem [shape: f32[128,64], index: 5, kind: input, shape index: {}]
  %s6 = inlined_call_operand.vmem [shape: f32[1,64], index: 6, kind: input, shape index: {}]
  %s7 = inlined_call_operand.vmem [shape: f32[64,128], index: 7, kind: input, shape index: {}]
  %s8 = inlined_call_operand.vmem [shape: f32[1,128], index: 8, kind: input, shape index: {}]
  %s9 = inlined_call_operand.vmem [shape: f32[256,128], index: 9, kind: output, shape index: {}]
  %s10 = sld [smem:[#allocation0]]
  $region46: #{mlp_forward.1} parent=0
    _
  %s12 = ssub.s32 1, %s10
  %s13 = scalar_select 0, %s12, %s10
  // Predicated region
  $region2: #{mlp_forward.1} parent=0 // pred_check
    _
  $region3: #{mlp_forward.1} parent=0 // pred_check_branch
    %15 = sbr.rel (0) target = $region5
  $region4: #{mlp_forward.1} parent=0 // pred_region
    _
  $region5: #{mlp_forward.1} parent=0 // pred_fallthru
    _
  // Predicated region
  $region6: #{mlp_forward.1} parent=0 // pred_check
    _
  $region7: #{mlp_forward.1} parent=0 // pred_check_branch
    %17 = sbr.rel (0) target = $region9
  $region8: #{mlp_forward.1} parent=0 // pred_region
    _
  $region9: #{mlp_forward.1} parent=0 // pred_fallthru
    _
  // Predicated region
  $region10: #{mlp_forward.1} parent=0 // pred_check
    _
  $region11: #{mlp_forward.1} parent=0 // pred_check_branch
    %19 = sbr.rel (0) target = $region13
  $region12: #{mlp_forward.1} parent=0 // pred_region
    _
  $region13: #{mlp_forward.1} parent=0 // pred_fallthru
    _
  // Predicated region
  $region14: #{mlp_forward.1} parent=0 // pred_check
    _
  $region15: #{mlp_forward.1} parent=0 // pred_check_branch
    %21 = sbr.rel (0) target = $region17
  $region16: #{mlp_forward.1} parent=0 // pred_region
    _
  $region17: #{mlp_forward.1} parent=0 // pred_fallthru
    _
  // Predicated region
  $region18: #{mlp_forward.1} parent=0 // pred_check
    _
  $region19: #{mlp_forward.1} parent=0 // pred_check_branch
    %23 = sbr.rel (0) target = $region21
  $region20: #{mlp_forward.1} parent=0 // pred_region
    _
  $region21: #{mlp_forward.1} parent=0 // pred_fallthru
    _
  // Predicated region
  $region22: #{mlp_forward.1} parent=0 // pred_check
    _
  $region23: #{mlp_forward.1} parent=0 // pred_check_branch
    %25 = sbr.rel (0) target = $region25
  $region24: #{mlp_forward.1} parent=0 // pred_region
    _
  $region25: #{mlp_forward.1} parent=0 // pred_fallthru
    _
  // Predicated region
  $region26: #{mlp_forward.1} parent=0 // pred_check
    _
  $region27: #{mlp_forward.1} parent=0 // pred_check_branch
    %27 = sbr.rel (0) target = $region29
  $region28: #{mlp_forward.1} parent=0 // pred_region
    _
  $region29: #{mlp_forward.1} parent=0 // pred_fallthru
    _
  // Predicated region
  $region30: #{mlp_forward.1} parent=0 // pred_check
    _
  $region31: #{mlp_forward.1} parent=0 // pred_check_branch
    %29 = sbr.rel (0) target = $region33
  $region32: #{mlp_forward.1} parent=0 // pred_region
    _
  $region33: #{mlp_forward.1} parent=0 // pred_fallthru
    _
  // Predicated region
  $region34: #{mlp_forward.1} parent=0 // pred_check
    _
  $region35: #{mlp_forward.1} parent=0 // pred_check_branch
    %31 = sbr.rel (0) target = $region37
  $region36: #{mlp_forward.1} parent=0 // pred_region
    _
  $region37: #{mlp_forward.1} parent=0 // pred_fallthru
    _
  %v32 = vld [vmem:[%s0] sm:$0xff]
  %v33 = vld [vmem:[%s0 + $0x8] sm:$0xff]
  %v34 = vld [vmem:[%s0 + $0x10] sm:$0xff]
  %v35 = vld [vmem:[%s0 + $0x18] sm:$0xff]
  %v36 = vld [vmem:[%s0 + $0x20] sm:$0xff]
  %v37 = vld [vmem:[%s0 + $0x28] sm:$0xff]
  %v38 = vld [vmem:[%s0 + $0x30] sm:$0xff]
  %v39 = vld [vmem:[%s0 + $0x38] sm:$0xff]
  %v40 = vld [vmem:[%s0 + $0x40] sm:$0xff]
  %v41 = vld [vmem:[%s0 + $0x48] sm:$0xff]
  %v42 = vld [vmem:[%s0 + $0x50] sm:$0xff]
  %v43 = vld [vmem:[%s0 + $0x58] sm:$0xff]
  %v44 = vld [vmem:[%s0 + $0x60] sm:$0xff]
  %v45 = vld [vmem:[%s0 + $0x68] sm:$0xff]
  %v46 = vld [vmem:[%s0 + $0x70] sm:$0xff]
  %v47 = vld [vmem:[%s0 + $0x78] sm:$0xff]
  %v48 = vld [vmem:[%s0 + $0x80] sm:$0xff]
  %v49 = vld [vmem:[%s0 + $0x88] sm:$0xff]
  %v50 = vld [vmem:[%s0 + $0x90] sm:$0xff]
  %v51 = vld [vmem:[%s0 + $0x98] sm:$0xff]
  %v52 = vld [vmem:[%s0 + $0xa0] sm:$0xff]
  %v53 = vld [vmem:[%s0 + $0xa8] sm:$0xff]
  %v54 = vld [vmem:[%s0 + $0xb0] sm:$0xff]
  %v55 = vld [vmem:[%s0 + $0xb8] sm:$0xff]
  %v56 = vld [vmem:[%s0 + $0xc0] sm:$0xff]
  %v57 = vld [vmem:[%s0 + $0xc8] sm:$0xff]
  %v58 = vld [vmem:[%s0 + $0xd0] sm:$0xff]
  %v59 = vld [vmem:[%s0 + $0xd8] sm:$0xff]
  %v60 = vld [vmem:[%s0 + $0xe0] sm:$0xff]
  %v61 = vld [vmem:[%s0 + $0xe8] sm:$0xff]
  %v62 = vld [vmem:[%s0 + $0xf0] sm:$0xff]
  %v63 = vld [vmem:[%s0 + $0xf8] sm:$0xff]
  %v64 = vld [vmem:[%s1] sm:$0xff]
  %v65 = vld [vmem:[%s1 + $0x8] sm:$0xff]
  %v66 = vld [vmem:[%s1 + $0x10] sm:$0xff]
  %v67 = vld [vmem:[%s1 + $0x18] sm:$0xff]
  %v68 = vld [vmem:[%s1 + $0x20] sm:$0xff]
  %v69 = vld [vmem:[%s1 + $0x28] sm:$0xff]
  %v70 = vld [vmem:[%s1 + $0x30] sm:$0xff]
  %v71 = vld [vmem:[%s1 + $0x38] sm:$0xff]
  %v72 = vld [vmem:[%s2] sm:$0x3]
  %v74 = vperm.slane %v72, 0
  %v75 = vperm.slane %v72, 1
  %vm78 = vcmask 261120
  %v80 = vsel %vm78, %v32, 0
  %v83 = vsel %vm78, %v33, 0
  %v86 = vsel %vm78, %v34, 0
  %v89 = vsel %vm78, %v35, 0
  %v92 = vsel %vm78, %v36, 0
  %v95 = vsel %vm78, %v37, 0
  %v98 = vsel %vm78, %v38, 0
  %v101 = vsel %vm78, %v39, 0
  %v104 = vsel %vm78, %v40, 0
  %v107 = vsel %vm78, %v41, 0
  %v110 = vsel %vm78, %v42, 0
  %v113 = vsel %vm78, %v43, 0
  %v116 = vsel %vm78, %v44, 0
  %v119 = vsel %vm78, %v45, 0
  %v122 = vsel %vm78, %v46, 0
  %v125 = vsel %vm78, %v47, 0
  %v128 = vsel %vm78, %v48, 0
  %v131 = vsel %vm78, %v49, 0
  %v134 = vsel %vm78, %v50, 0
  %v137 = vsel %vm78, %v51, 0
  %v140 = vsel %vm78, %v52, 0
  %v143 = vsel %vm78, %v53, 0
  %v146 = vsel %vm78, %v54, 0
  %v149 = vsel %vm78, %v55, 0
  %v152 = vsel %vm78, %v56, 0
  %v155 = vsel %vm78, %v57, 0
  %v158 = vsel %vm78, %v58, 0
  %v161 = vsel %vm78, %v59, 0
  %v164 = vsel %vm78, %v60, 0
  %v167 = vsel %vm78, %v61, 0
  %v170 = vsel %vm78, %v62, 0
  %v173 = vsel %vm78, %v63, 0
  %175 = vmatpush.msra.mxu0 0.0
  %176 = vmatpush.msra.mxu0 0.0
  %177 = vmatpush.msra.mxu0 0.0
  %178 = vmatpush.msra.mxu0 0.0
  %179 = vmatpush.msra.mxu0 0.0
  %180 = vmatpush.msra.mxu0 0.0
  %181 = vmatpush.msra.mxu0 0.0
  %182 = vmatpush.msra.mxu0 0.0
  %183 = vmatpush.msra.mxu0 0.0
  %184 = vmatpush.msra.mxu0 0.0
  %185 = vmatpush.msra.mxu0 0.0
  %186 = vmatpush.msra.mxu0 0.0
  %187 = vmatpush.msra.mxu0 %v70
  %188 = vmatpush.msra.mxu0 %v68
  %189 = vmatpush.msra.mxu0 %v66
  %190 = vmatpush.msra.mxu0 %v64
  %191 = vmatmul.f32.gmra.mxu0 %v80
  %v192 = vpop.f32.mrf.mxu0
  %v193 = vadd.f32 %v74, %v192
  %194 = vmatmul.f32.gmra.mxu0 %v83
  %v195 = vpop.f32.mrf.mxu0
  %v196 = vadd.f32 %v74, %v195
  %197 = vmatmul.f32.gmra.mxu0 %v86
  %v198 = vpop.f32.mrf.mxu0
  %v199 = vadd.f32 %v74, %v198
  %200 = vmatmul.f32.gmra.mxu0 %v89
  %v201 = vpop.f32.mrf.mxu0
  %v202 = vadd.f32 %v74, %v201
  %203 = vmatmul.f32.gmra.mxu0 %v92
  %v204 = vpop.f32.mrf.mxu0
  %v205 = vadd.f32 %v74, %v204
  %206 = vmatmul.f32.gmra.mxu0 %v95
  %v207 = vpop.f32.mrf.mxu0
  %v208 = vadd.f32 %v74, %v207
  %209 = vmatmul.f32.gmra.mxu0 %v98
  %v210 = vpop.f32.mrf.mxu0
  %v211 = vadd.f32 %v74, %v210
  %212 = vmatmul.f32.gmra.mxu0 %v101
  %v213 = vpop.f32.mrf.mxu0
  %v214 = vadd.f32 %v74, %v213
  %215 = vmatmul.f32.gmra.mxu0 %v104
  %v216 = vpop.f32.mrf.mxu0
  %v217 = vadd.f32 %v74, %v216
  %218 = vmatmul.f32.gmra.mxu0 %v107
  %v219 = vpop.f32.mrf.mxu0
  %v220 = vadd.f32 %v74, %v219
  %221 = vmatmul.f32.gmra.mxu0 %v110
  %v222 = vpop.f32.mrf.mxu0
  %v223 = vadd.f32 %v74, %v222
  %224 = vmatmul.f32.gmra.mxu0 %v113
  %v225 = vpop.f32.mrf.mxu0
  %v226 = vadd.f32 %v74, %v225
  %227 = vmatmul.f32.gmra.mxu0 %v116
  %v228 = vpop.f32.mrf.mxu0
  %v229 = vadd.f32 %v74, %v228
  %230 = vmatmul.f32.gmra.mxu0 %v119
  %v231 = vpop.f32.mrf.mxu0
  %v232 = vadd.f32 %v74, %v231
  %233 = vmatmul.f32.gmra.mxu0 %v122
  %v234 = vpop.f32.mrf.mxu0
  %v235 = vadd.f32 %v74, %v234
  %236 = vmatmul.f32.gmra.mxu0 %v125
  %v237 = vpop.f32.mrf.mxu0
  %v238 = vadd.f32 %v74, %v237
  %239 = vmatmul.f32.gmra.mxu0 %v128
  %v240 = vpop.f32.mrf.mxu0
  %v241 = vadd.f32 %v74, %v240
  %242 = vmatmul.f32.gmra.mxu0 %v131
  %v243 = vpop.f32.mrf.mxu0
  %v244 = vadd.f32 %v74, %v243
  %245 = vmatmul.f32.gmra.mxu0 %v134
  %v246 = vpop.f32.mrf.mxu0
  %v247 = vadd.f32 %v74, %v246
  %248 = vmatmul.f32.gmra.mxu0 %v137
  %v249 = vpop.f32.mrf.mxu0
  %v250 = vadd.f32 %v74, %v249
  %251 = vmatmul.f32.gmra.mxu0 %v140
  %v252 = vpop.f32.mrf.mxu0
  %v253 = vadd.f32 %v74, %v252
  %254 = vmatmul.f32.gmra.mxu0 %v143
  %v255 = vpop.f32.mrf.mxu0
  %v256 = vadd.f32 %v74, %v255
  %257 = vmatmul.f32.gmra.mxu0 %v146
  %v258 = vpop.f32.mrf.mxu0
  %v259 = vadd.f32 %v74, %v258
  %260 = vmatmul.f32.gmra.mxu0 %v149
  %v261 = vpop.f32.mrf.mxu0
  %v262 = vadd.f32 %v74, %v261
  %263 = vmatmul.f32.gmra.mxu0 %v152
  %v264 = vpop.f32.mrf.mxu0
  %v265 = vadd.f32 %v74, %v264
  %266 = vmatmul.f32.gmra.mxu0 %v155
  %v267 = vpop.f32.mrf.mxu0
  %v268 = vadd.f32 %v74, %v267
  %269 = vmatmul.f32.gmra.mxu0 %v158
  %v270 = vpop.f32.mrf.mxu0
  %v271 = vadd.f32 %v74, %v270
  %272 = vmatmul.f32.gmra.mxu0 %v161
  %v273 = vpop.f32.mrf.mxu0
  %v274 = vadd.f32 %v74, %v273
  %275 = vmatmul.f32.gmra.mxu0 %v164
  %v276 = vpop.f32.mrf.mxu0
  %v277 = vadd.f32 %v74, %v276
  %278 = vmatmul.f32.gmra.mxu0 %v167
  %v279 = vpop.f32.mrf.mxu0
  %v280 = vadd.f32 %v74, %v279
  %281 = vmatmul.f32.gmra.mxu0 %v170
  %v282 = vpop.f32.mrf.mxu0
  %v283 = vadd.f32 %v74, %v282
  %284 = vmatmul.f32.gmra.mxu0 %v173
  %v285 = vpop.f32.mrf.mxu0
  %v286 = vadd.f32 %v74, %v285
  %287 = vdwg.mxu0
  %288 = vmatpush.msra.mxu0 0.0
  %289 = vmatpush.msra.mxu0 0.0
  %290 = vmatpush.msra.mxu0 0.0
  %291 = vmatpush.msra.mxu0 0.0
  %292 = vmatpush.msra.mxu0 0.0
  %293 = vmatpush.msra.mxu0 0.0
  %294 = vmatpush.msra.mxu0 0.0
  %295 = vmatpush.msra.mxu0 0.0
  %296 = vmatpush.msra.mxu0 0.0
  %297 = vmatpush.msra.mxu0 0.0
  %298 = vmatpush.msra.mxu0 0.0
  %299 = vmatpush.msra.mxu0 0.0
  %300 = vmatpush.msra.mxu0 %v71
  %301 = vmatpush.msra.mxu0 %v69
  %302 = vmatpush.msra.mxu0 %v67
  %303 = vmatpush.msra.mxu0 %v65
  %304 = vmatmul.f32.gmra.mxu0 %v80
  %v305 = vpop.f32.mrf.mxu0
  %v306 = vadd.f32 %v75, %v305
  %307 = vmatmul.f32.gmra.mxu0 %v83
  %v308 = vpop.f32.mrf.mxu0
  %v309 = vadd.f32 %v75, %v308
  %310 = vmatmul.f32.gmra.mxu0 %v86
  %v311 = vpop.f32.mrf.mxu0
  %v312 = vadd.f32 %v75, %v311
  %313 = vmatmul.f32.gmra.mxu0 %v89
  %v314 = vpop.f32.mrf.mxu0
  %v315 = vadd.f32 %v75, %v314
  %316 = vmatmul.f32.gmra.mxu0 %v92
  %v317 = vpop.f32.mrf.mxu0
  %v318 = vadd.f32 %v75, %v317
  %319 = vmatmul.f32.gmra.mxu0 %v95
  %v320 = vpop.f32.mrf.mxu0
  %v321 = vadd.f32 %v75, %v320
  %322 = vmatmul.f32.gmra.mxu0 %v98
  %v323 = vpop.f32.mrf.mxu0
  %v324 = vadd.f32 %v75, %v323
  %325 = vmatmul.f32.gmra.mxu0 %v101
  %v326 = vpop.f32.mrf.mxu0
  %v327 = vadd.f32 %v75, %v326
  %328 = vmatmul.f32.gmra.mxu0 %v104
  %v329 = vpop.f32.mrf.mxu0
  %v330 = vadd.f32 %v75, %v329
  %331 = vmatmul.f32.gmra.mxu0 %v107
  %v332 = vpop.f32.mrf.mxu0
  %v333 = vadd.f32 %v75, %v332
  %334 = vmatmul.f32.gmra.mxu0 %v110
  %v335 = vpop.f32.mrf.mxu0
  %v336 = vadd.f32 %v75, %v335
  %337 = vmatmul.f32.gmra.mxu0 %v113
  %v338 = vpop.f32.mrf.mxu0
  %v339 = vadd.f32 %v75, %v338
  %340 = vmatmul.f32.gmra.mxu0 %v116
  %v341 = vpop.f32.mrf.mxu0
  %v342 = vadd.f32 %v75, %v341
  %343 = vmatmul.f32.gmra.mxu0 %v119
  %v344 = vpop.f32.mrf.mxu0
  %v345 = vadd.f32 %v75, %v344
  %346 = vmatmul.f32.gmra.mxu0 %v122
  %v347 = vpop.f32.mrf.mxu0
  %v348 = vadd.f32 %v75, %v347
  %349 = vmatmul.f32.gmra.mxu0 %v125
  %v350 = vpop.f32.mrf.mxu0
  %v351 = vadd.f32 %v75, %v350
  %352 = vmatmul.f32.gmra.mxu0 %v128
  %v353 = vpop.f32.mrf.mxu0
  %v354 = vadd.f32 %v75, %v353
  %355 = vmatmul.f32.gmra.mxu0 %v131
  %v356 = vpop.f32.mrf.mxu0
  %v357 = vadd.f32 %v75, %v356
  %358 = vmatmul.f32.gmra.mxu0 %v134
  %v359 = vpop.f32.mrf.mxu0
  %v360 = vadd.f32 %v75, %v359
  %361 = vmatmul.f32.gmra.mxu0 %v137
  %v362 = vpop.f32.mrf.mxu0
  %v363 = vadd.f32 %v75, %v362
  %364 = vmatmul.f32.gmra.mxu0 %v140
  %v365 = vpop.f32.mrf.mxu0
  %v366 = vadd.f32 %v75, %v365
  %367 = vmatmul.f32.gmra.mxu0 %v143
  %v368 = vpop.f32.mrf.mxu0
  %v369 = vadd.f32 %v75, %v368
  %370 = vmatmul.f32.gmra.mxu0 %v146
  %v371 = vpop.f32.mrf.mxu0
  %v372 = vadd.f32 %v75, %v371
  %373 = vmatmul.f32.gmra.mxu0 %v149
  %v374 = vpop.f32.mrf.mxu0
  %v375 = vadd.f32 %v75, %v374
  %376 = vmatmul.f32.gmra.mxu0 %v152
  %v377 = vpop.f32.mrf.mxu0
  %v378 = vadd.f32 %v75, %v377
  %379 = vmatmul.f32.gmra.mxu0 %v155
  %v380 = vpop.f32.mrf.mxu0
  %v381 = vadd.f32 %v75, %v380
  %382 = vmatmul.f32.gmra.mxu0 %v158
  %v383 = vpop.f32.mrf.mxu0
  %v384 = vadd.f32 %v75, %v383
  %385 = vmatmul.f32.gmra.mxu0 %v161
  %v386 = vpop.f32.mrf.mxu0
  %v387 = vadd.f32 %v75, %v386
  %388 = vmatmul.f32.gmra.mxu0 %v164
  %v389 = vpop.f32.mrf.mxu0
  %v390 = vadd.f32 %v75, %v389
  %391 = vmatmul.f32.gmra.mxu0 %v167
  %v392 = vpop.f32.mrf.mxu0
  %v393 = vadd.f32 %v75, %v392
  %394 = vmatmul.f32.gmra.mxu0 %v170
  %v395 = vpop.f32.mrf.mxu0
  %v396 = vadd.f32 %v75, %v395
  %397 = vmatmul.f32.gmra.mxu0 %v173
  %v398 = vpop.f32.mrf.mxu0
  %v399 = vadd.f32 %v75, %v398
  %400 = vdwg.mxu0
  %v401 = vmax.f32 %v193, 0.0
  %v402 = vmax.f32 %v306, 0.0
  %v403 = vmax.f32 %v196, 0.0
  %v404 = vmax.f32 %v309, 0.0
  %v405 = vmax.f32 %v199, 0.0
  %v406 = vmax.f32 %v312, 0.0
  %v407 = vmax.f32 %v202, 0.0
  %v408 = vmax.f32 %v315, 0.0
  %v409 = vmax.f32 %v205, 0.0
  %v410 = vmax.f32 %v318, 0.0
  %v411 = vmax.f32 %v208, 0.0
  %v412 = vmax.f32 %v321, 0.0
  %v413 = vmax.f32 %v211, 0.0
  %v414 = vmax.f32 %v324, 0.0
  %v415 = vmax.f32 %v214, 0.0
  %v416 = vmax.f32 %v327, 0.0
  %v417 = vmax.f32 %v217, 0.0
  %v418 = vmax.f32 %v330, 0.0
  %v419 = vmax.f32 %v220, 0.0
  %v420 = vmax.f32 %v333, 0.0
  %v421 = vmax.f32 %v223, 0.0
  %v422 = vmax.f32 %v336, 0.0
  %v423 = vmax.f32 %v226, 0.0
  %v424 = vmax.f32 %v339, 0.0
  %v425 = vmax.f32 %v229, 0.0
  %v426 = vmax.f32 %v342, 0.0
  %v427 = vmax.f32 %v232, 0.0
  %v428 = vmax.f32 %v345, 0.0
  %v429 = vmax.f32 %v235, 0.0
  %v430 = vmax.f32 %v348, 0.0
  %v431 = vmax.f32 %v238, 0.0
  %v432 = vmax.f32 %v351, 0.0
  %v433 = vmax.f32 %v241, 0.0
  %v434 = vmax.f32 %v354, 0.0
  %v435 = vmax.f32 %v244, 0.0
  %v436 = vmax.f32 %v357, 0.0
  %v437 = vmax.f32 %v247, 0.0
  %v438 = vmax.f32 %v360, 0.0
  %v439 = vmax.f32 %v250, 0.0
  %v440 = vmax.f32 %v363, 0.0
  %v441 = vmax.f32 %v253, 0.0
  %v442 = vmax.f32 %v366, 0.0
  %v443 = vmax.f32 %v256, 0.0
  %v444 = vmax.f32 %v369, 0.0
  %v445 = vmax.f32 %v259, 0.0
  %v446 = vmax.f32 %v372, 0.0
  %v447 = vmax.f32 %v262, 0.0
  %v448 = vmax.f32 %v375, 0.0
  %v449 = vmax.f32 %v265, 0.0
  %v450 = vmax.f32 %v378, 0.0
  %v451 = vmax.f32 %v268, 0.0
  %v452 = vmax.f32 %v381, 0.0
  %v453 = vmax.f32 %v271, 0.0
  %v454 = vmax.f32 %v384, 0.0
  %v455 = vmax.f32 %v274, 0.0
  %v456 = vmax.f32 %v387, 0.0
  %v457 = vmax.f32 %v277, 0.0
  %v458 = vmax.f32 %v390, 0.0
  %v459 = vmax.f32 %v280, 0.0
  %v460 = vmax.f32 %v393, 0.0
  %v461 = vmax.f32 %v283, 0.0
  %v462 = vmax.f32 %v396, 0.0
  %v463 = vmax.f32 %v286, 0.0
  %v464 = vmax.f32 %v399, 0.0
  %v465 = vld [vmem:[%s3] sm:$0xff]
  %v466 = vld [vmem:[%s3 + $0x8] sm:$0xff]
  %v467 = vld [vmem:[%s3 + $0x10] sm:$0xff]
  %v468 = vld [vmem:[%s3 + $0x18] sm:$0xff]
  %v469 = vld [vmem:[%s3 + $0x20] sm:$0xff]
  %v470 = vld [vmem:[%s3 + $0x28] sm:$0xff]
  %v471 = vld [vmem:[%s3 + $0x30] sm:$0xff]
  %v472 = vld [vmem:[%s3 + $0x38] sm:$0xff]
  %v473 = vld [vmem:[%s3 + $0x40] sm:$0xff]
  %v474 = vld [vmem:[%s3 + $0x48] sm:$0xff]
  %v475 = vld [vmem:[%s3 + $0x50] sm:$0xff]
  %v476 = vld [vmem:[%s3 + $0x58] sm:$0xff]
  %v477 = vld [vmem:[%s3 + $0x60] sm:$0xff]
  %v478 = vld [vmem:[%s3 + $0x68] sm:$0xff]
  %v479 = vld [vmem:[%s3 + $0x70] sm:$0xff]
  %v480 = vld [vmem:[%s3 + $0x78] sm:$0xff]
  %v481 = vld [vmem:[%s3 + $0x80] sm:$0xff]
  %v482 = vld [vmem:[%s3 + $0x88] sm:$0xff]
  %v483 = vld [vmem:[%s3 + $0x90] sm:$0xff]
  %v484 = vld [vmem:[%s3 + $0x98] sm:$0xff]
  %v485 = vld [vmem:[%s3 + $0xa0] sm:$0xff]
  %v486 = vld [vmem:[%s3 + $0xa8] sm:$0xff]
  %v487 = vld [vmem:[%s3 + $0xb0] sm:$0xff]
  %v488 = vld [vmem:[%s3 + $0xb8] sm:$0xff]
  %v489 = vld [vmem:[%s3 + $0xc0] sm:$0xff]
  %v490 = vld [vmem:[%s3 + $0xc8] sm:$0xff]
  %v491 = vld [vmem:[%s3 + $0xd0] sm:$0xff]
  %v492 = vld [vmem:[%s3 + $0xd8] sm:$0xff]
  %v493 = vld [vmem:[%s3 + $0xe0] sm:$0xff]
  %v494 = vld [vmem:[%s3 + $0xe8] sm:$0xff]
  %v495 = vld [vmem:[%s3 + $0xf0] sm:$0xff]
  %v496 = vld [vmem:[%s3 + $0xf8] sm:$0xff]
  %v497 = vld [vmem:[%s4] sm:$0x1]
  %v499 = vperm.slane %v497, 0
  %501 = vmatpush.msra.mxu0 %v480
  %502 = vmatpush.msra.mxu0 %v479
  %503 = vmatpush.msra.mxu0 %v478
  %504 = vmatpush.msra.mxu0 %v477
  %505 = vmatpush.msra.mxu0 %v476
  %506 = vmatpush.msra.mxu0 %v475
  %507 = vmatpush.msra.mxu0 %v474
  %508 = vmatpush.msra.mxu0 %v473
  %509 = vmatpush.msra.mxu0 %v472
  %510 = vmatpush.msra.mxu0 %v471
  %511 = vmatpush.msra.mxu0 %v470
  %512 = vmatpush.msra.mxu0 %v469
  %513 = vmatpush.msra.mxu0 %v468
  %514 = vmatpush.msra.mxu0 %v467
  %515 = vmatpush.msra.mxu0 %v466
  %516 = vmatpush.msra.mxu0 %v465
  %517 = vmatmul.f32.gmra.mxu0 %v401
  %v518 = vpop.f32.mrf.mxu0
  %v519 = vadd.f32 %v499, %v518
  %520 = vmatmul.f32.gmra.mxu0 %v403
  %v521 = vpop.f32.mrf.mxu0
  %v522 = vadd.f32 %v499, %v521
  %523 = vmatmul.f32.gmra.mxu0 %v405
  %v524 = vpop.f32.mrf.mxu0
  %v525 = vadd.f32 %v499, %v524
  %526 = vmatmul.f32.gmra.mxu0 %v407
  %v527 = vpop.f32.mrf.mxu0
  %v528 = vadd.f32 %v499, %v527
  %529 = vmatmul.f32.gmra.mxu0 %v409
  %v530 = vpop.f32.mrf.mxu0
  %v531 = vadd.f32 %v499, %v530
  %532 = vmatmul.f32.gmra.mxu0 %v411
  %v533 = vpop.f32.mrf.mxu0
  %v534 = vadd.f32 %v499, %v533
  %535 = vmatmul.f32.gmra.mxu0 %v413
  %v536 = vpop.f32.mrf.mxu0
  %v537 = vadd.f32 %v499, %v536
  %538 = vmatmul.f32.gmra.mxu0 %v415
  %v539 = vpop.f32.mrf.mxu0
  %v540 = vadd.f32 %v499, %v539
  %541 = vmatmul.f32.gmra.mxu0 %v417
  %v542 = vpop.f32.mrf.mxu0
  %v543 = vadd.f32 %v499, %v542
  %544 = vmatmul.f32.gmra.mxu0 %v419
  %v545 = vpop.f32.mrf.mxu0
  %v546 = vadd.f32 %v499, %v545
  %547 = vmatmul.f32.gmra.mxu0 %v421
  %v548 = vpop.f32.mrf.mxu0
  %v549 = vadd.f32 %v499, %v548
  %550 = vmatmul.f32.gmra.mxu0 %v423
  %v551 = vpop.f32.mrf.mxu0
  %v552 = vadd.f32 %v499, %v551
  %553 = vmatmul.f32.gmra.mxu0 %v425
  %v554 = vpop.f32.mrf.mxu0
  %v555 = vadd.f32 %v499, %v554
  %556 = vmatmul.f32.gmra.mxu0 %v427
  %v557 = vpop.f32.mrf.mxu0
  %v558 = vadd.f32 %v499, %v557
  %559 = vmatmul.f32.gmra.mxu0 %v429
  %v560 = vpop.f32.mrf.mxu0
  %v561 = vadd.f32 %v499, %v560
  %562 = vmatmul.f32.gmra.mxu0 %v431
  %v563 = vpop.f32.mrf.mxu0
  %v564 = vadd.f32 %v499, %v563
  %565 = vmatmul.f32.gmra.mxu0 %v433
  %v566 = vpop.f32.mrf.mxu0
  %v567 = vadd.f32 %v499, %v566
  %568 = vmatmul.f32.gmra.mxu0 %v435
  %v569 = vpop.f32.mrf.mxu0
  %v570 = vadd.f32 %v499, %v569
  %571 = vmatmul.f32.gmra.mxu0 %v437
  %v572 = vpop.f32.mrf.mxu0
  %v573 = vadd.f32 %v499, %v572
  %574 = vmatmul.f32.gmra.mxu0 %v439
  %v575 = vpop.f32.mrf.mxu0
  %v576 = vadd.f32 %v499, %v575
  %577 = vmatmul.f32.gmra.mxu0 %v441
  %v578 = vpop.f32.mrf.mxu0
  %v579 = vadd.f32 %v499, %v578
  %580 = vmatmul.f32.gmra.mxu0 %v443
  %v581 = vpop.f32.mrf.mxu0
  %v582 = vadd.f32 %v499, %v581
  %583 = vmatmul.f32.gmra.mxu0 %v445
  %v584 = vpop.f32.mrf.mxu0
  %v585 = vadd.f32 %v499, %v584
  %586 = vmatmul.f32.gmra.mxu0 %v447
  %v587 = vpop.f32.mrf.mxu0
  %v588 = vadd.f32 %v499, %v587
  %589 = vmatmul.f32.gmra.mxu0 %v449
  %v590 = vpop.f32.mrf.mxu0
  %v591 = vadd.f32 %v499, %v590
  %592 = vmatmul.f32.gmra.mxu0 %v451
  %v593 = vpop.f32.mrf.mxu0
  %v594 = vadd.f32 %v499, %v593
  %595 = vmatmul.f32.gmra.mxu0 %v453
  %v596 = vpop.f32.mrf.mxu0
  %v597 = vadd.f32 %v499, %v596
  %598 = vmatmul.f32.gmra.mxu0 %v455
  %v599 = vpop.f32.mrf.mxu0
  %v600 = vadd.f32 %v499, %v599
  %601 = vmatmul.f32.gmra.mxu0 %v457
  %v602 = vpop.f32.mrf.mxu0
  %v603 = vadd.f32 %v499, %v602
  %604 = vmatmul.f32.gmra.mxu0 %v459
  %v605 = vpop.f32.mrf.mxu0
  %v606 = vadd.f32 %v499, %v605
  %607 = vmatmul.f32.gmra.mxu0 %v461
  %v608 = vpop.f32.mrf.mxu0
  %v609 = vadd.f32 %v499, %v608
  %610 = vmatmul.f32.gmra.mxu0 %v463
  %v611 = vpop.f32.mrf.mxu0
  %v612 = vadd.f32 %v499, %v611
  %613 = vdwg.mxu0
  %614 = vmatpush.msra.mxu0 %v496
  %615 = vmatpush.msra.mxu0 %v495
  %616 = vmatpush.msra.mxu0 %v494
  %617 = vmatpush.msra.mxu0 %v493
  %618 = vmatpush.msra.mxu0 %v492
  %619 = vmatpush.msra.mxu0 %v491
  %620 = vmatpush.msra.mxu0 %v490
  %621 = vmatpush.msra.mxu0 %v489
  %622 = vmatpush.msra.mxu0 %v488
  %623 = vmatpush.msra.mxu0 %v487
  %624 = vmatpush.msra.mxu0 %v486
  %625 = vmatpush.msra.mxu0 %v485
  %626 = vmatpush.msra.mxu0 %v484
  %627 = vmatpush.msra.mxu0 %v483
  %628 = vmatpush.msra.mxu0 %v482
  %629 = vmatpush.msra.mxu0 %v481
  %630 = vmatmul.f32.gmra.mxu0 %v402
  %v631 = vpop.f32.mrf.mxu0
  %v632 = vadd.f32 %v519, %v631
  %633 = vmatmul.f32.gmra.mxu0 %v404
  %v634 = vpop.f32.mrf.mxu0
  %v635 = vadd.f32 %v522, %v634
  %636 = vmatmul.f32.gmra.mxu0 %v406
  %v637 = vpop.f32.mrf.mxu0
  %v638 = vadd.f32 %v525, %v637
  %639 = vmatmul.f32.gmra.mxu0 %v408
  %v640 = vpop.f32.mrf.mxu0
  %v641 = vadd.f32 %v528, %v640
  %642 = vmatmul.f32.gmra.mxu0 %v410
  %v643 = vpop.f32.mrf.mxu0
  %v644 = vadd.f32 %v531, %v643
  %645 = vmatmul.f32.gmra.mxu0 %v412
  %v646 = vpop.f32.mrf.mxu0
  %v647 = vadd.f32 %v534, %v646
  %648 = vmatmul.f32.gmra.mxu0 %v414
  %v649 = vpop.f32.mrf.mxu0
  %v650 = vadd.f32 %v537, %v649
  %651 = vmatmul.f32.gmra.mxu0 %v416
  %v652 = vpop.f32.mrf.mxu0
  %v653 = vadd.f32 %v540, %v652
  %654 = vmatmul.f32.gmra.mxu0 %v418
  %v655 = vpop.f32.mrf.mxu0
  %v656 = vadd.f32 %v543, %v655
  %657 = vmatmul.f32.gmra.mxu0 %v420
  %v658 = vpop.f32.mrf.mxu0
  %v659 = vadd.f32 %v546, %v658
  %660 = vmatmul.f32.gmra.mxu0 %v422
  %v661 = vpop.f32.mrf.mxu0
  %v662 = vadd.f32 %v549, %v661
  %663 = vmatmul.f32.gmra.mxu0 %v424
  %v664 = vpop.f32.mrf.mxu0
  %v665 = vadd.f32 %v552, %v664
  %666 = vmatmul.f32.gmra.mxu0 %v426
  %v667 = vpop.f32.mrf.mxu0
  %v668 = vadd.f32 %v555, %v667
  %669 = vmatmul.f32.gmra.mxu0 %v428
  %v670 = vpop.f32.mrf.mxu0
  %v671 = vadd.f32 %v558, %v670
  %672 = vmatmul.f32.gmra.mxu0 %v430
  %v673 = vpop.f32.mrf.mxu0
  %v674 = vadd.f32 %v561, %v673
  %675 = vmatmul.f32.gmra.mxu0 %v432
  %v676 = vpop.f32.mrf.mxu0
  %v677 = vadd.f32 %v564, %v676
  %678 = vmatmul.f32.gmra.mxu0 %v434
  %v679 = vpop.f32.mrf.mxu0
  %v680 = vadd.f32 %v567, %v679
  %681 = vmatmul.f32.gmra.mxu0 %v436
  %v682 = vpop.f32.mrf.mxu0
  %v683 = vadd.f32 %v570, %v682
  %684 = vmatmul.f32.gmra.mxu0 %v438
  %v685 = vpop.f32.mrf.mxu0
  %v686 = vadd.f32 %v573, %v685
  %687 = vmatmul.f32.gmra.mxu0 %v440
  %v688 = vpop.f32.mrf.mxu0
  %v689 = vadd.f32 %v576, %v688
  %690 = vmatmul.f32.gmra.mxu0 %v442
  %v691 = vpop.f32.mrf.mxu0
  %v692 = vadd.f32 %v579, %v691
  %693 = vmatmul.f32.gmra.mxu0 %v444
  %v694 = vpop.f32.mrf.mxu0
  %v695 = vadd.f32 %v582, %v694
  %696 = vmatmul.f32.gmra.mxu0 %v446
  %v697 = vpop.f32.mrf.mxu0
  %v698 = vadd.f32 %v585, %v697
  %699 = vmatmul.f32.gmra.mxu0 %v448
  %v700 = vpop.f32.mrf.mxu0
  %v701 = vadd.f32 %v588, %v700
  %702 = vmatmul.f32.gmra.mxu0 %v450
  %v703 = vpop.f32.mrf.mxu0
  %v704 = vadd.f32 %v591, %v703
  %705 = vmatmul.f32.gmra.mxu0 %v452
  %v706 = vpop.f32.mrf.mxu0
  %v707 = vadd.f32 %v594, %v706
  %708 = vmatmul.f32.gmra.mxu0 %v454
  %v709 = vpop.f32.mrf.mxu0
  %v710 = vadd.f32 %v597, %v709
  %711 = vmatmul.f32.gmra.mxu0 %v456
  %v712 = vpop.f32.mrf.mxu0
  %v713 = vadd.f32 %v600, %v712
  %714 = vmatmul.f32.gmra.mxu0 %v458
  %v715 = vpop.f32.mrf.mxu0
  %v716 = vadd.f32 %v603, %v715
  %717 = vmatmul.f32.gmra.mxu0 %v460
  %v718 = vpop.f32.mrf.mxu0
  %v719 = vadd.f32 %v606, %v718
  %720 = vmatmul.f32.gmra.mxu0 %v462
  %v721 = vpop.f32.mrf.mxu0
  %v722 = vadd.f32 %v609, %v721
  %723 = vmatmul.f32.gmra.mxu0 %v464
  %v724 = vpop.f32.mrf.mxu0
  %v725 = vadd.f32 %v612, %v724
  %726 = vdwg.mxu0
  %v727 = vmax.f32 %v632, 0.0
  %v728 = vmax.f32 %v635, 0.0
  %v729 = vmax.f32 %v638, 0.0
  %v730 = vmax.f32 %v641, 0.0
  %v731 = vmax.f32 %v644, 0.0
  %v732 = vmax.f32 %v647, 0.0
  %v733 = vmax.f32 %v650, 0.0
  %v734 = vmax.f32 %v653, 0.0
  %v735 = vmax.f32 %v656, 0.0
  %v736 = vmax.f32 %v659, 0.0
  %v737 = vmax.f32 %v662, 0.0
  %v738 = vmax.f32 %v665, 0.0
  %v739 = vmax.f32 %v668, 0.0
  %v740 = vmax.f32 %v671, 0.0
  %v741 = vmax.f32 %v674, 0.0
  %v742 = vmax.f32 %v677, 0.0
  %v743 = vmax.f32 %v680, 0.0
  %v744 = vmax.f32 %v683, 0.0
  %v745 = vmax.f32 %v686, 0.0
  %v746 = vmax.f32 %v689, 0.0
  %v747 = vmax.f32 %v692, 0.0
  %v748 = vmax.f32 %v695, 0.0
  %v749 = vmax.f32 %v698, 0.0
  %v750 = vmax.f32 %v701, 0.0
  %v751 = vmax.f32 %v704, 0.0
  %v752 = vmax.f32 %v707, 0.0
  %v753 = vmax.f32 %v710, 0.0
  %v754 = vmax.f32 %v713, 0.0
  %v755 = vmax.f32 %v716, 0.0
  %v756 = vmax.f32 %v719, 0.0
  %v757 = vmax.f32 %v722, 0.0
  %v758 = vmax.f32 %v725, 0.0
  %v759 = vld [vmem:[%s5] sm:$0xff]
  %v760 = vld [vmem:[%s5 + $0x8] sm:$0xff]
  %v761 = vld [vmem:[%s5 + $0x10] sm:$0xff]
  %v762 = vld [vmem:[%s5 + $0x18] sm:$0xff]
  %v763 = vld [vmem:[%s5 + $0x20] sm:$0xff]
  %v764 = vld [vmem:[%s5 + $0x28] sm:$0xff]
  %v765 = vld [vmem:[%s5 + $0x30] sm:$0xff]
  %v766 = vld [vmem:[%s5 + $0x38] sm:$0xff]
  %v767 = vld [vmem:[%s5 + $0x40] sm:$0xff]
  %v768 = vld [vmem:[%s5 + $0x48] sm:$0xff]
  %v769 = vld [vmem:[%s5 + $0x50] sm:$0xff]
  %v770 = vld [vmem:[%s5 + $0x58] sm:$0xff]
  %v771 = vld [vmem:[%s5 + $0x60] sm:$0xff]
  %v772 = vld [vmem:[%s5 + $0x68] sm:$0xff]
  %v773 = vld [vmem:[%s5 + $0x70] sm:$0xff]
  %v774 = vld [vmem:[%s5 + $0x78] sm:$0xff]
  %v775 = vld [vmem:[%s6] sm:$0x1]
  %v777 = vperm.slane %v775, 0
  %779 = vmatpush.msra.mxu0 %v774
  %780 = vmatpush.msra.mxu0 %v773
  %781 = vmatpush.msra.mxu0 %v772
  %782 = vmatpush.msra.mxu0 %v771
  %783 = vmatpush.msra.mxu0 %v770
  %784 = vmatpush.msra.mxu0 %v769
  %785 = vmatpush.msra.mxu0 %v768
  %786 = vmatpush.msra.mxu0 %v767
  %787 = vmatpush.msra.mxu0 %v766
  %788 = vmatpush.msra.mxu0 %v765
  %789 = vmatpush.msra.mxu0 %v764
  %790 = vmatpush.msra.mxu0 %v763
  %791 = vmatpush.msra.mxu0 %v762
  %792 = vmatpush.msra.mxu0 %v761
  %793 = vmatpush.msra.mxu0 %v760
  %794 = vmatpush.msra.mxu0 %v759
  %795 = vmatmul.f32.gmra.mxu0 %v727
  %v796 = vpop.f32.mrf.mxu0
  %v797 = vadd.f32 %v777, %v796
  %798 = vmatmul.f32.gmra.mxu0 %v728
  %v799 = vpop.f32.mrf.mxu0
  %v800 = vadd.f32 %v777, %v799
  %801 = vmatmul.f32.gmra.mxu0 %v729
  %v802 = vpop.f32.mrf.mxu0
  %v803 = vadd.f32 %v777, %v802
  %804 = vmatmul.f32.gmra.mxu0 %v730
  %v805 = vpop.f32.mrf.mxu0
  %v806 = vadd.f32 %v777, %v805
  %807 = vmatmul.f32.gmra.mxu0 %v731
  %v808 = vpop.f32.mrf.mxu0
  %v809 = vadd.f32 %v777, %v808
  %810 = vmatmul.f32.gmra.mxu0 %v732
  %v811 = vpop.f32.mrf.mxu0
  %v812 = vadd.f32 %v777, %v811
  %813 = vmatmul.f32.gmra.mxu0 %v733
  %v814 = vpop.f32.mrf.mxu0
  %v815 = vadd.f32 %v777, %v814
  %816 = vmatmul.f32.gmra.mxu0 %v734
  %v817 = vpop.f32.mrf.mxu0
  %v818 = vadd.f32 %v777, %v817
  %819 = vmatmul.f32.gmra.mxu0 %v735
  %v820 = vpop.f32.mrf.mxu0
  %v821 = vadd.f32 %v777, %v820
  %822 = vmatmul.f32.gmra.mxu0 %v736
  %v823 = vpop.f32.mrf.mxu0
  %v824 = vadd.f32 %v777, %v823
  %825 = vmatmul.f32.gmra.mxu0 %v737
  %v826 = vpop.f32.mrf.mxu0
  %v827 = vadd.f32 %v777, %v826
  %828 = vmatmul.f32.gmra.mxu0 %v738
  %v829 = vpop.f32.mrf.mxu0
  %v830 = vadd.f32 %v777, %v829
  %831 = vmatmul.f32.gmra.mxu0 %v739
  %v832 = vpop.f32.mrf.mxu0
  %v833 = vadd.f32 %v777, %v832
  %834 = vmatmul.f32.gmra.mxu0 %v740
  %v835 = vpop.f32.mrf.mxu0
  %v836 = vadd.f32 %v777, %v835
  %837 = vmatmul.f32.gmra.mxu0 %v741
  %v838 = vpop.f32.mrf.mxu0
  %v839 = vadd.f32 %v777, %v838
  %840 = vmatmul.f32.gmra.mxu0 %v742
  %v841 = vpop.f32.mrf.mxu0
  %v842 = vadd.f32 %v777, %v841
  %843 = vmatmul.f32.gmra.mxu0 %v743
  %v844 = vpop.f32.mrf.mxu0
  %v845 = vadd.f32 %v777, %v844
  %846 = vmatmul.f32.gmra.mxu0 %v744
  %v847 = vpop.f32.mrf.mxu0
  %v848 = vadd.f32 %v777, %v847
  %849 = vmatmul.f32.gmra.mxu0 %v745
  %v850 = vpop.f32.mrf.mxu0
  %v851 = vadd.f32 %v777, %v850
  %852 = vmatmul.f32.gmra.mxu0 %v746
  %v853 = vpop.f32.mrf.mxu0
  %v854 = vadd.f32 %v777, %v853
  %855 = vmatmul.f32.gmra.mxu0 %v747
  %v856 = vpop.f32.mrf.mxu0
  %v857 = vadd.f32 %v777, %v856
  %858 = vmatmul.f32.gmra.mxu0 %v748
  %v859 = vpop.f32.mrf.mxu0
  %v860 = vadd.f32 %v777, %v859
  %861 = vmatmul.f32.gmra.mxu0 %v749
  %v862 = vpop.f32.mrf.mxu0
  %v863 = vadd.f32 %v777, %v862
  %864 = vmatmul.f32.gmra.mxu0 %v750
  %v865 = vpop.f32.mrf.mxu0
  %v866 = vadd.f32 %v777, %v865
  %867 = vmatmul.f32.gmra.mxu0 %v751
  %v868 = vpop.f32.mrf.mxu0
  %v869 = vadd.f32 %v777, %v868
  %870 = vmatmul.f32.gmra.mxu0 %v752
  %v871 = vpop.f32.mrf.mxu0
  %v872 = vadd.f32 %v777, %v871
  %873 = vmatmul.f32.gmra.mxu0 %v753
  %v874 = vpop.f32.mrf.mxu0
  %v875 = vadd.f32 %v777, %v874
  %876 = vmatmul.f32.gmra.mxu0 %v754
  %v877 = vpop.f32.mrf.mxu0
  %v878 = vadd.f32 %v777, %v877
  %879 = vmatmul.f32.gmra.mxu0 %v755
  %v880 = vpop.f32.mrf.mxu0
  %v881 = vadd.f32 %v777, %v880
  %882 = vmatmul.f32.gmra.mxu0 %v756
  %v883 = vpop.f32.mrf.mxu0
  %v884 = vadd.f32 %v777, %v883
  %885 = vmatmul.f32.gmra.mxu0 %v757
  %v886 = vpop.f32.mrf.mxu0
  %v887 = vadd.f32 %v777, %v886
  %888 = vmatmul.f32.gmra.mxu0 %v758
  %v889 = vpop.f32.mrf.mxu0
  %v890 = vadd.f32 %v777, %v889
  %891 = vdwg.mxu0
  %v892 = vmax.f32 %v797, 0.0
  %v893 = vmax.f32 %v800, 0.0
  %v894 = vmax.f32 %v803, 0.0
  %v895 = vmax.f32 %v806, 0.0
  %v896 = vmax.f32 %v809, 0.0
  %v897 = vmax.f32 %v812, 0.0
  %v898 = vmax.f32 %v815, 0.0
  %v899 = vmax.f32 %v818, 0.0
  %v900 = vmax.f32 %v821, 0.0
  %v901 = vmax.f32 %v824, 0.0
  %v902 = vmax.f32 %v827, 0.0
  %v903 = vmax.f32 %v830, 0.0
  %v904 = vmax.f32 %v833, 0.0
  %v905 = vmax.f32 %v836, 0.0
  %v906 = vmax.f32 %v839, 0.0
  %v907 = vmax.f32 %v842, 0.0
  %v908 = vmax.f32 %v845, 0.0
  %v909 = vmax.f32 %v848, 0.0
  %v910 = vmax.f32 %v851, 0.0
  %v911 = vmax.f32 %v854, 0.0
  %v912 = vmax.f32 %v857, 0.0
  %v913 = vmax.f32 %v860, 0.0
  %v914 = vmax.f32 %v863, 0.0
  %v915 = vmax.f32 %v866, 0.0
  %v916 = vmax.f32 %v869, 0.0
  %v917 = vmax.f32 %v872, 0.0
  %v918 = vmax.f32 %v875, 0.0
  %v919 = vmax.f32 %v878, 0.0
  %v920 = vmax.f32 %v881, 0.0
  %v921 = vmax.f32 %v884, 0.0
  %v922 = vmax.f32 %v887, 0.0
  %v923 = vmax.f32 %v890, 0.0
  %v924 = vld [vmem:[%s7] sm:$0xff]
  %v925 = vld [vmem:[%s7 + $0x8] sm:$0xff]
  %v926 = vld [vmem:[%s7 + $0x10] sm:$0xff]
  %v927 = vld [vmem:[%s7 + $0x18] sm:$0xff]
  %v928 = vld [vmem:[%s7 + $0x20] sm:$0xff]
  %v929 = vld [vmem:[%s7 + $0x28] sm:$0xff]
  %v930 = vld [vmem:[%s7 + $0x30] sm:$0xff]
  %v931 = vld [vmem:[%s7 + $0x38] sm:$0xff]
  %v932 = vld [vmem:[%s8] sm:$0x1]
  %v934 = vperm.slane %v932, 0
  %vm936 = vcmask 523264
  %v938 = vsel %vm936, %v892, 0
  %v941 = vsel %vm936, %v893, 0
  %v944 = vsel %vm936, %v894, 0
  %v947 = vsel %vm936, %v895, 0
  %v950 = vsel %vm936, %v896, 0
  %v953 = vsel %vm936, %v897, 0
  %v956 = vsel %vm936, %v898, 0
  %v959 = vsel %vm936, %v899, 0
  %v962 = vsel %vm936, %v900, 0
  %v965 = vsel %vm936, %v901, 0
  %v968 = vsel %vm936, %v902, 0
  %v971 = vsel %vm936, %v903, 0
  %v974 = vsel %vm936, %v904, 0
  %v977 = vsel %vm936, %v905, 0
  %v980 = vsel %vm936, %v906, 0
  %v983 = vsel %vm936, %v907, 0
  %v986 = vsel %vm936, %v908, 0
  %v989 = vsel %vm936, %v909, 0
  %v992 = vsel %vm936, %v910, 0
  %v995 = vsel %vm936, %v911, 0
  %v998 = vsel %vm936, %v912, 0
  %v1001 = vsel %vm936, %v913, 0
  %v1004 = vsel %vm936, %v914, 0
  %v1007 = vsel %vm936, %v915, 0
  %v1010 = vsel %vm936, %v916, 0
  %v1013 = vsel %vm936, %v917, 0
  %v1016 = vsel %vm936, %v918, 0
  %v1019 = vsel %vm936, %v919, 0
  %v1022 = vsel %vm936, %v920, 0
  %v1025 = vsel %vm936, %v921, 0
  %v1028 = vsel %vm936, %v922, 0
  %v1031 = vsel %vm936, %v923, 0
  %1033 = vmatpush.msra.mxu0 0.0
  %1034 = vmatpush.msra.mxu0 0.0
  %1035 = vmatpush.msra.mxu0 0.0
  %1036 = vmatpush.msra.mxu0 0.0
  %1037 = vmatpush.msra.mxu0 0.0
  %1038 = vmatpush.msra.mxu0 0.0
  %1039 = vmatpush.msra.mxu0 0.0
  %1040 = vmatpush.msra.mxu0 0.0
  %1041 = vmatpush.msra.mxu0 %v931
  %1042 = vmatpush.msra.mxu0 %v930
  %1043 = vmatpush.msra.mxu0 %v929
  %1044 = vmatpush.msra.mxu0 %v928
  %1045 = vmatpush.msra.mxu0 %v927
  %1046 = vmatpush.msra.mxu0 %v926
  %1047 = vmatpush.msra.mxu0 %v925
  %1048 = vmatpush.msra.mxu0 %v924
  %1049 = vmatmul.f32.gmra.mxu0 %v938
  %v1050 = vpop.f32.mrf.mxu0
  %v1051 = vadd.f32 %v934, %v1050
  %1052 = vmatmul.f32.gmra.mxu0 %v941
  %v1053 = vpop.f32.mrf.mxu0
  %v1054 = vadd.f32 %v934, %v1053
  %1055 = vmatmul.f32.gmra.mxu0 %v944
  %v1056 = vpop.f32.mrf.mxu0
  %v1057 = vadd.f32 %v934, %v1056
  %1058 = vmatmul.f32.gmra.mxu0 %v947
  %v1059 = vpop.f32.mrf.mxu0
  %v1060 = vadd.f32 %v934, %v1059
  %1061 = vmatmul.f32.gmra.mxu0 %v950
  %v1062 = vpop.f32.mrf.mxu0
  %v1063 = vadd.f32 %v934, %v1062
  %1064 = vmatmul.f32.gmra.mxu0 %v953
  %v1065 = vpop.f32.mrf.mxu0
  %v1066 = vadd.f32 %v934, %v1065
  %1067 = vmatmul.f32.gmra.mxu0 %v956
  %v1068 = vpop.f32.mrf.mxu0
  %v1069 = vadd.f32 %v934, %v1068
  %1070 = vmatmul.f32.gmra.mxu0 %v959
  %v1071 = vpop.f32.mrf.mxu0
  %v1072 = vadd.f32 %v934, %v1071
  %1073 = vmatmul.f32.gmra.mxu0 %v962
  %v1074 = vpop.f32.mrf.mxu0
  %v1075 = vadd.f32 %v934, %v1074
  %1076 = vmatmul.f32.gmra.mxu0 %v965
  %v1077 = vpop.f32.mrf.mxu0
  %v1078 = vadd.f32 %v934, %v1077
  %1079 = vmatmul.f32.gmra.mxu0 %v968
  %v1080 = vpop.f32.mrf.mxu0
  %v1081 = vadd.f32 %v934, %v1080
  %1082 = vmatmul.f32.gmra.mxu0 %v971
  %v1083 = vpop.f32.mrf.mxu0
  %v1084 = vadd.f32 %v934, %v1083
  %1085 = vmatmul.f32.gmra.mxu0 %v974
  %v1086 = vpop.f32.mrf.mxu0
  %v1087 = vadd.f32 %v934, %v1086
  %1088 = vmatmul.f32.gmra.mxu0 %v977
  %v1089 = vpop.f32.mrf.mxu0
  %v1090 = vadd.f32 %v934, %v1089
  %1091 = vmatmul.f32.gmra.mxu0 %v980
  %v1092 = vpop.f32.mrf.mxu0
  %v1093 = vadd.f32 %v934, %v1092
  %1094 = vmatmul.f32.gmra.mxu0 %v983
  %v1095 = vpop.f32.mrf.mxu0
  %v1096 = vadd.f32 %v934, %v1095
  %1097 = vmatmul.f32.gmra.mxu0 %v986
  %v1098 = vpop.f32.mrf.mxu0
  %v1099 = vadd.f32 %v934, %v1098
  %1100 = vmatmul.f32.gmra.mxu0 %v989
  %v1101 = vpop.f32.mrf.mxu0
  %v1102 = vadd.f32 %v934, %v1101
  %1103 = vmatmul.f32.gmra.mxu0 %v992
  %v1104 = vpop.f32.mrf.mxu0
  %v1105 = vadd.f32 %v934, %v1104
  %1106 = vmatmul.f32.gmra.mxu0 %v995
  %v1107 = vpop.f32.mrf.mxu0
  %v1108 = vadd.f32 %v934, %v1107
  %1109 = vmatmul.f32.gmra.mxu0 %v998
  %v1110 = vpop.f32.mrf.mxu0
  %v1111 = vadd.f32 %v934, %v1110
  %1112 = vmatmul.f32.gmra.mxu0 %v1001
  %v1113 = vpop.f32.mrf.mxu0
  %v1114 = vadd.f32 %v934, %v1113
  %1115 = vmatmul.f32.gmra.mxu0 %v1004
  %v1116 = vpop.f32.mrf.mxu0
  %v1117 = vadd.f32 %v934, %v1116
  %1118 = vmatmul.f32.gmra.mxu0 %v1007
  %v1119 = vpop.f32.mrf.mxu0
  %v1120 = vadd.f32 %v934, %v1119
  %1121 = vmatmul.f32.gmra.mxu0 %v1010
  %v1122 = vpop.f32.mrf.mxu0
  %v1123 = vadd.f32 %v934, %v1122
  %1124 = vmatmul.f32.gmra.mxu0 %v1013
  %v1125 = vpop.f32.mrf.mxu0
  %v1126 = vadd.f32 %v934, %v1125
  %1127 = vmatmul.f32.gmra.mxu0 %v1016
  %v1128 = vpop.f32.mrf.mxu0
  %v1129 = vadd.f32 %v934, %v1128
  %1130 = vmatmul.f32.gmra.mxu0 %v1019
  %v1131 = vpop.f32.mrf.mxu0
  %v1132 = vadd.f32 %v934, %v1131
  %1133 = vmatmul.f32.gmra.mxu0 %v1022
  %v1134 = vpop.f32.mrf.mxu0
  %v1135 = vadd.f32 %v934, %v1134
  %1136 = vmatmul.f32.gmra.mxu0 %v1025
  %v1137 = vpop.f32.mrf.mxu0
  %v1138 = vadd.f32 %v934, %v1137
  %1139 = vmatmul.f32.gmra.mxu0 %v1028
  %v1140 = vpop.f32.mrf.mxu0
  %v1141 = vadd.f32 %v934, %v1140
  %1142 = vmatmul.f32.gmra.mxu0 %v1031
  %v1143 = vpop.f32.mrf.mxu0
  %v1144 = vadd.f32 %v934, %v1143
  %1145 = vdwg.mxu0
  %1146 = vst [vmem:[%s9] sm:$0xff] %v1051
  %1147 = vst [vmem:[%s9 + $0x8] sm:$0xff] %v1054
  %1148 = vst [vmem:[%s9 + $0x10] sm:$0xff] %v1057
  %1149 = vst [vmem:[%s9 + $0x18] sm:$0xff] %v1060
  %1150 = vst [vmem:[%s9 + $0x20] sm:$0xff] %v1063
  %1151 = vst [vmem:[%s9 + $0x28] sm:$0xff] %v1066
  %1152 = vst [vmem:[%s9 + $0x30] sm:$0xff] %v1069
  %1153 = vst [vmem:[%s9 + $0x38] sm:$0xff] %v1072
  %1154 = vst [vmem:[%s9 + $0x40] sm:$0xff] %v1075
  %1155 = vst [vmem:[%s9 + $0x48] sm:$0xff] %v1078
  %1156 = vst [vmem:[%s9 + $0x50] sm:$0xff] %v1081
  %1157 = vst [vmem:[%s9 + $0x58] sm:$0xff] %v1084
  %1158 = vst [vmem:[%s9 + $0x60] sm:$0xff] %v1087
  %1159 = vst [vmem:[%s9 + $0x68] sm:$0xff] %v1090
  %1160 = vst [vmem:[%s9 + $0x70] sm:$0xff] %v1093
  %1161 = vst [vmem:[%s9 + $0x78] sm:$0xff] %v1096
  %1162 = vst [vmem:[%s9 + $0x80] sm:$0xff] %v1099
  %1163 = vst [vmem:[%s9 + $0x88] sm:$0xff] %v1102
  %1164 = vst [vmem:[%s9 + $0x90] sm:$0xff] %v1105
  %1165 = vst [vmem:[%s9 + $0x98] sm:$0xff] %v1108
  %1166 = vst [vmem:[%s9 + $0xa0] sm:$0xff] %v1111
  %1167 = vst [vmem:[%s9 + $0xa8] sm:$0xff] %v1114
  %1168 = vst [vmem:[%s9 + $0xb0] sm:$0xff] %v1117
  %1169 = vst [vmem:[%s9 + $0xb8] sm:$0xff] %v1120
  %1170 = vst [vmem:[%s9 + $0xc0] sm:$0xff] %v1123
  %1171 = vst [vmem:[%s9 + $0xc8] sm:$0xff] %v1126
  %1172 = vst [vmem:[%s9 + $0xd0] sm:$0xff] %v1129
  %1173 = vst [vmem:[%s9 + $0xd8] sm:$0xff] %v1132
  %1174 = vst [vmem:[%s9 + $0xe0] sm:$0xff] %v1135
  %1175 = vst [vmem:[%s9 + $0xe8] sm:$0xff] %v1138
  %1176 = vst [vmem:[%s9 + $0xf0] sm:$0xff] %v1141
  %1177 = vst [vmem:[%s9 + $0xf8] sm:$0xff] %v1144
  // Predicated region
  $region38: #{mlp_forward.1} parent=0 // pred_check
    _
  $region39: #{mlp_forward.1} parent=0 // pred_check_branch
    %1179 = sbr.rel (0) target = $region41
  $region40: #{mlp_forward.1} parent=0 // pred_region
    _
  $region41: #{mlp_forward.1} parent=0 // pred_fallthru
    _
  // Predicated region
  $region42: #{mlp_forward.1} parent=0 // pred_check
    _
  $region43: #{mlp_forward.1} parent=0 // pred_check_branch
    %1181 = sbr.rel (0) target = $region45
  $region44: #{mlp_forward.1} parent=0 // pred_region
    _
  $region45: #{mlp_forward.1} parent=0 // pred_fallthru
    _

</llo_original>
